<compile_context>
chip_gen: v7x
topology: tpu7x:2x2x1
jax: 0.10.0
libtpu: 0.0.40
codegen_flags: <defaults>
</compile_context>

<pallas_src>
import math
import functools

import jax
import jax.numpy as jnp
import numpy as np
from jax.experimental import pallas as pl
from jax.experimental.pallas import tpu as pltpu


def _search_attention_kernel(x_ref, mask_ref, kbd_ref, vbd_ref, m_ref,
                             wqt_ref, bq_ref, ones_ref,
                             ctx_ref, score_ref,
                             *, num_heads, seq_k, score_pad):
    H, Sk = num_heads, seq_k

    x = x_ref[0]                  # (Sq, E)      bf16
    kbd = kbd_ref[0]              # (E, H*Sk)    bf16, block-diagonal K^T
    vbd = vbd_ref[0]              # (H*Sk, E)    bf16, block-diagonal V
    m = m_ref[0]                  # (1, H*Sk)    f32, M tiled across heads
    dpm = mask_ref[0]             # (1, Sq)      f32, per-query mask (lane-dense row)
    wqt = wqt_ref[...]            # (E, E)       bf16, pre-transposed, pre-scaled
    bq = bq_ref[...]              # (1, E)       f32, pre-scaled
    ones_bd = ones_ref[...]       # (H*Sk, H*Sk) f32, ones in diagonal Sk x Sk blocks

    Sq = x.shape[0]

    # ---- fused query projection (1/sqrt(dh) folded into wqt / bq) -----------
    q = jnp.dot(x, wqt, preferred_element_type=jnp.float32) + bq        # (Sq, E) f32

    # ---- fused all-head scores: block-diag K^T puts head h at columns -------
    #      [h*Sk, (h+1)*Sk); off-diagonal blocks are zero, so no cross-head terms.
    s = jnp.dot(q.astype(jnp.bfloat16), kbd,
                preferred_element_type=jnp.float32) - m                  # (Sq, H*Sk)

    # ---- per-head softmax over keys ------------------------------------------
    # Softmax is shift-invariant, so the global row max is a valid stabiliser
    # for every head; denominators are still strictly per-head via ones_bd.
    s = s - jnp.max(s, axis=-1, keepdims=True)
    p_un = jnp.exp(s)                                                    # f32
    # Per-head row sums, broadcast back over each head's Sk columns, in a single
    # (Sq, H*Sk) @ (H*Sk, H*Sk) f32 MXU push (avoids lane reshapes / slicing).
    denom = jnp.dot(p_un, ones_bd, preferred_element_type=jnp.float32)
    denom = jnp.maximum(denom, 1e-30)          # guard against full underflow
    # approx=True -> EUP slot (free); ~1e-3 rel error, documented / eval-only.
    p = p_un * pl.reciprocal(denom, approx=True)

    # ---- per-query mask (applied after softmax, as in the reference) --------
    # Relayout the lane-dense (1, Sq) mask row into a (Sq, 1) column using an
    # iota/select/reduce (no transpose primitive required).
    ri = jax.lax.broadcasted_iota(jnp.int32, (Sq, Sq), 0)
    ci = jax.lax.broadcasted_iota(jnp.int32, (Sq, Sq), 1)
    dpm_col = jnp.sum(jnp.where(ri == ci, dpm, 0.0), axis=-1, keepdims=True)
    p = p * dpm_col                                                      # (Sq, H*Sk)

    # ---- target_score: sum over heads of max over queries --------------------
    mx = jnp.max(p, axis=0, keepdims=True)                               # (1, H*Sk)
    sc = mx[:, 0:Sk]
    for h in range(1, H):                      # H is small; static lane slices
        sc = sc + mx[:, h * Sk:(h + 1) * Sk]
    if score_pad > Sk:                         # pad -> lane-dense (1, 128) store
        sc = jnp.concatenate(
            [sc, jnp.zeros((1, score_pad - Sk), jnp.float32)], axis=-1)
    score_ref[0] = sc

    # ---- fused context: block-diag V lands head h at columns [h*dh,(h+1)*dh),
    # which is exactly the final (Sq, E) layout -> a single store.  Dropout is
    # identity in eval mode.
    ctx = jnp.dot(p.astype(jnp.bfloat16), vbd,
                  preferred_element_type=jnp.float32)                    # (Sq, E)
    ctx_ref[0] = ctx.astype(ctx_ref.dtype)


def _round_up(x, m):
    return ((x + m - 1) // m) * m


def _padded_block_bytes(shape, dtype):
    """Conservative VMEM bytes for one pipeline buffer of a block."""
    dims = list(shape)
    if len(dims) >= 1:
        dims[-1] = _round_up(dims[-1], 128)
    if len(dims) >= 2:
        dims[-2] = _round_up(dims[-2], 8)
    n = 1
    for d in dims:
        n *= int(d)
    return n * np.dtype(dtype).itemsize


def search_attention_forward(dp_emb, dp_mask, K, V, M, Wq, bq, num_heads):
    """Pallas implementation of SearchAttention.forward (eval mode)."""
    B, Sq, E = dp_emb.shape
    _, H, Sk, dh = K.shape
    assert H == num_heads and E == H * dh
    HSk = H * Sk
    SCORE_PAD = _round_up(max(Sk, 128), 128)

    scale = 1.0 / math.sqrt(dh)

    # --- parameter / layout glue (trace time, outside the kernel) ------------
    # nn.Linear: y = x @ W^T + b; fold the 1/sqrt(dh) attention scale in.
    wqt = (Wq.T * scale).astype(jnp.bfloat16)                 # (E, E)
    bqs = (bq * scale).reshape(1, E).astype(jnp.float32)      # (1, E)
    x_bf = dp_emb.astype(jnp.bfloat16)                        # (B, Sq, E)

    # Block-diagonal K^T / V: head h occupies the [h*dh,(h+1)*dh) x
    # [h*Sk,(h+1)*Sk) block.  This fuses all per-head matmuls into single MXU
    # pushes and makes K/V lane-dense.  (Appropriate while E and H*Sk fit one
    # MXU tile; at much larger shapes switch to per-head / batched matmuls.)
    eyeH = jnp.eye(H, dtype=jnp.float32)
    Kbd = jnp.einsum('bhkd,hg->bhdgk', K.astype(jnp.float32), eyeH)
    Kbd = Kbd.reshape(B, E, HSk).astype(jnp.bfloat16)         # (B, E, H*Sk)
    Vbd = jnp.einsum('bhkd,hg->bhkgd', V.astype(jnp.float32), eyeH)
    Vbd = Vbd.reshape(B, HSk, E).astype(jnp.bfloat16)         # (B, H*Sk, E)

    # M (B,1,1,Sk) broadcasts over heads/queries -> tile across head columns.
    m_tiled = jnp.tile(M.reshape(B, 1, Sk), (1, H, 1)).reshape(B, 1, HSk)
    m_tiled = m_tiled.astype(jnp.float32)

    # dp_mask (B,1,1,Sq) -> lane-dense (B, 1, Sq) row per batch.
    mask_r = dp_mask.reshape(B, 1, Sq).astype(jnp.float32)

    # Ones-block-diagonal matrix for per-head softmax denominators.
    ones_bd = jnp.kron(jnp.eye(H, dtype=jnp.float32),
                       jnp.ones((Sk, Sk), dtype=jnp.float32))  # (H*Sk, H*Sk)

    kernel = functools.partial(_search_attention_kernel,
                               num_heads=H, seq_k=Sk, score_pad=SCORE_PAD)

    in_specs = [
        pl.BlockSpec((1, Sq, E), lambda b: (b, 0, 0)),        # dp_emb (bf16)
        pl.BlockSpec((1, 1, Sq), lambda b: (b, 0, 0)),        # dp_mask row
        pl.BlockSpec((1, E, HSk), lambda b: (b, 0, 0)),       # block-diag K^T
        pl.BlockSpec((1, HSk, E), lambda b: (b, 0, 0)),       # block-diag V
        pl.BlockSpec((1, 1, HSk), lambda b: (b, 0, 0)),       # M tiled over heads
        # Constant-index weight block: single-buffer to halve its VMEM
        # footprint (matters at large E on v7x's 64 MiB VMEM).
        pl.BlockSpec((E, E), lambda b: (0, 0),
                     pipeline_mode=pl.Buffered(buffer_count=1)),
        pl.BlockSpec((1, E), lambda b: (0, 0)),               # bq (scaled)
        pl.BlockSpec((HSk, HSk), lambda b: (0, 0)),           # ones block-diag
    ]
    out_specs = [
        pl.BlockSpec((1, Sq, E), lambda b: (b, 0, 0)),            # context
        pl.BlockSpec((1, 1, SCORE_PAD), lambda b: (b, 0, 0)),     # target_score (padded)
    ]

    inputs = (x_bf, mask_r, Kbd, Vbd, m_tiled, wqt, bqs, ones_bd)
    out_shapes = (
        jax.ShapeDtypeStruct((B, Sq, E), jnp.float32),
        jax.ShapeDtypeStruct((B, 1, SCORE_PAD), jnp.float32),
    )

    # Advisory cost estimate so XLA schedules around this tiny custom call.
    flops = 2 * B * Sq * (E * E + E * HSk + HSk * HSk + HSk * E)
    bytes_accessed = sum(int(np.prod(a.shape)) * int(np.dtype(a.dtype).itemsize)
                         for a in inputs)
    bytes_accessed += sum(int(np.prod(s.shape)) * int(np.dtype(s.dtype).itemsize)
                          for s in out_shapes)
    cost = pl.CostEstimate(flops=int(flops),
                           transcendentals=int(B * Sq * HSk),
                           bytes_accessed=int(bytes_accessed))

    # Explicit VMEM budget: double-buffered blocks + generous headroom
    # (v7x has only 64 MiB VMEM / 32 MiB scoped default, half of v5e/v6e).
    block_bytes = 0
    for spec, arr in zip(in_specs, inputs):
        block_bytes += _padded_block_bytes(spec.block_shape, arr.dtype)
    for spec, s in zip(out_specs, out_shapes):
        block_bytes += _padded_block_bytes(spec.block_shape, s.dtype)
    vmem_limit = int(min(max(4 * block_bytes, 16 * 2**20), 64 * 2**20))

    ctx, score_padded = pl.pallas_call(
        kernel,
        out_shape=out_shapes,
        grid_spec=pltpu.PrefetchScalarGridSpec(
            num_scalar_prefetch=0,
            grid=(B,),                 # one batch per program; heads fused in-kernel.
            in_specs=in_specs,
            out_specs=out_specs,
        ),
        compiler_params=pltpu.CompilerParams(
            dimension_semantics=("parallel",),
            vmem_limit_bytes=vmem_limit),
        cost_estimate=cost,
    )(*inputs)

    # Context already in (B, Sq, E); slice the lane-padded score back to Sk.
    return ctx, score_padded[:, 0, :Sk]


def reference_forward(dp_emb, dp_mask, K, V, M, Wq, bq, num_heads):
    """Pure-JAX f32 reference mirroring the PyTorch forward (eval mode)."""
    B, Sq, E = dp_emb.shape
    H = num_heads
    dh = E // H
    q = dp_emb @ Wq.T + bq
    q = q.reshape(B, Sq, H, dh).transpose(0, 2, 1, 3)              # (B,H,Sq,dh)
    scores = jnp.einsum('bhqd,bhkd->bhqk', q, K) / math.sqrt(dh)
    scores = scores - M
    probs = jax.nn.softmax(scores, axis=-1)
    probs = jnp.swapaxes(jnp.swapaxes(probs, -1, -2) * dp_mask, -1, -2)
    target_score = jnp.sum(jnp.max(probs, axis=2), axis=1)         # (B, Sk)
    ctx = jnp.einsum('bhqk,bhkd->bhqd', probs, V)
    ctx = ctx.transpose(0, 2, 1, 3).reshape(B, Sq, E)
    return ctx, target_score


if __name__ == "__main__":
    B, Sq, Sk = 2, 8, 16
    H, dh = 4, 8
    E = H * dh  # emb_size = all_head_size = 32

    key = jax.random.PRNGKey(0)
    k1, k2, k3, k4, k5, k6, k7 = jax.random.split(key, 7)

    dp_emb = jax.random.normal(k1, (B, Sq, E), dtype=jnp.float32)
    dp_mask = (jax.random.uniform(k2, (B, 1, 1, Sq)) > 0.3).astype(jnp.float32)
    K = jax.random.normal(k3, (B, H, Sk, dh), dtype=jnp.float32)
    V = jax.random.normal(k4, (B, H, Sk, dh), dtype=jnp.float32)
    M = (jax.random.uniform(k5, (B, 1, 1, Sk)) > 0.5).astype(jnp.float32) * 1e4

    # Deterministic parameter init (shapes from nn.Linear(emb, all_head_size)).
    bound = 1.0 / math.sqrt(E)
    Wq = jax.random.uniform(k6, (E, E), minval=-bound, maxval=bound, dtype=jnp.float32)
    bq = jax.random.uniform(k7, (E,), minval=-bound, maxval=bound, dtype=jnp.float32)

    ctx, tscore = search_attention_forward(dp_emb, dp_mask, K, V, M, Wq, bq, H)
    jax.block_until_ready((ctx, tscore))

    ctx_ref, tscore_ref = reference_forward(dp_emb, dp_mask, K, V, M, Wq, bq, H)
    # Tolerance reflects bf16 matmul operands (per perf review) and the
    # approximate EUP reciprocal, compared against the pure-f32 reference.
    np.testing.assert_allclose(np.asarray(ctx), np.asarray(ctx_ref),
                               atol=2e-2, rtol=2e-2)
    np.testing.assert_allclose(np.asarray(tscore), np.asarray(tscore_ref),
                               atol=2e-2, rtol=2e-2)

    print("KERNEL_OK")
</pallas_src>

<mosaic_0001>
module attributes {stable_mosaic.version = 11 : i64} {
  func.func @_search_attention_kernel(%arg0: i32, %arg1: memref<1x8x32xbf16, #tpu.memory_space<vmem>>, %arg2: memref<1x1x8xf32, #tpu.memory_space<vmem>>, %arg3: memref<1x32x64xbf16, #tpu.memory_space<vmem>>, %arg4: memref<1x64x32xbf16, #tpu.memory_space<vmem>>, %arg5: memref<1x1x64xf32, #tpu.memory_space<vmem>>, %arg6: memref<32x32xbf16, #tpu.memory_space<vmem>>, %arg7: memref<1x32xf32, #tpu.memory_space<vmem>>, %arg8: memref<64x64xf32, #tpu.memory_space<vmem>>, %arg9: memref<1x8x32xf32, #tpu.memory_space<vmem>>, %arg10: memref<1x1x128xf32, #tpu.memory_space<vmem>>) attributes {dimension_semantics = [#tpu.dimension_semantics<parallel>], iteration_bounds = array<i64: 2>, scalar_prefetch = 0 : i64, scratch_operands = 0 : i64, tpu.core_type = #tpu.core_type<tc>, window_params = [{transform_indices = @transform_0, window_bounds = array<i64: 1, 8, 32>}, {transform_indices = @transform_1, window_bounds = array<i64: 1, 1, 8>}, {transform_indices = @transform_2, window_bounds = array<i64: 1, 32, 64>}, {transform_indices = @transform_3, window_bounds = array<i64: 1, 64, 32>}, {transform_indices = @transform_4, window_bounds = array<i64: 1, 1, 64>}, {pipeline_mode = #tpu.pipeline_mode<synchronous>, transform_indices = @transform_5, window_bounds = array<i64: 32, 32>}, {pipeline_mode = #tpu.pipeline_mode<synchronous>, transform_indices = @transform_6, window_bounds = array<i64: 1, 32>}, {pipeline_mode = #tpu.pipeline_mode<synchronous>, transform_indices = @transform_7, window_bounds = array<i64: 64, 64>}, {transform_indices = @transform_8, window_bounds = array<i64: 1, 8, 32>}, {transform_indices = @transform_9, window_bounds = array<i64: 1, 1, 128>}]} {
    %c0 = arith.constant 0 : index
    %c0_0 = arith.constant 0 : index
    %c0_1 = arith.constant 0 : index
    %0 = vector.load %arg1[%c0, %c0_0, %c0_1] : memref<1x8x32xbf16, #tpu.memory_space<vmem>>, vector<1x8x32xbf16>
    %1 = vector.shape_cast %0 : vector<1x8x32xbf16> to vector<8x32xbf16>
    %c0_2 = arith.constant 0 : index
    %c0_3 = arith.constant 0 : index
    %c0_4 = arith.constant 0 : index
    %2 = vector.load %arg3[%c0_2, %c0_3, %c0_4] : memref<1x32x64xbf16, #tpu.memory_space<vmem>>, vector<1x32x64xbf16>
    %3 = vector.shape_cast %2 : vector<1x32x64xbf16> to vector<32x64xbf16>
    %c0_5 = arith.constant 0 : index
    %c0_6 = arith.constant 0 : index
    %c0_7 = arith.constant 0 : index
    %4 = vector.load %arg4[%c0_5, %c0_6, %c0_7] : memref<1x64x32xbf16, #tpu.memory_space<vmem>>, vector<1x64x32xbf16>
    %5 = vector.shape_cast %4 : vector<1x64x32xbf16> to vector<64x32xbf16>
    %c0_8 = arith.constant 0 : index
    %c0_9 = arith.constant 0 : index
    %c0_10 = arith.constant 0 : index
    %6 = vector.load %arg5[%c0_8, %c0_9, %c0_10] : memref<1x1x64xf32, #tpu.memory_space<vmem>>, vector<1x1x64xf32>
    %7 = vector.shape_cast %6 : vector<1x1x64xf32> to vector<1x64xf32>
    %c0_11 = arith.constant 0 : index
    %c0_12 = arith.constant 0 : index
    %c0_13 = arith.constant 0 : index
    %8 = vector.load %arg2[%c0_11, %c0_12, %c0_13] : memref<1x1x8xf32, #tpu.memory_space<vmem>>, vector<1x1x8xf32>
    %9 = vector.shape_cast %8 : vector<1x1x8xf32> to vector<1x8xf32>
    %c0_14 = arith.constant 0 : index
    %c0_15 = arith.constant 0 : index
    %10 = vector.load %arg6[%c0_14, %c0_15] : memref<32x32xbf16, #tpu.memory_space<vmem>>, vector<32x32xbf16>
    %c0_16 = arith.constant 0 : index
    %c0_17 = arith.constant 0 : index
    %11 = vector.load %arg7[%c0_16, %c0_17] : memref<1x32xf32, #tpu.memory_space<vmem>>, vector<1x32xf32>
    %c0_18 = arith.constant 0 : index
    %c0_19 = arith.constant 0 : index
    %12 = vector.load %arg8[%c0_18, %c0_19] : memref<64x64xf32, #tpu.memory_space<vmem>>, vector<64x64xf32>
    %cst = arith.constant dense<0.000000e+00> : vector<8x32xf32>
    %13 = tpu.matmul %1, %10, %cst {dimension_numbers = #tpu.dot_dimension_numbers<[1], [0], [0], [1], [0, 0, 1, 1], [], []>} : vector<8x32xbf16>, vector<32x32xbf16>, vector<8x32xf32> -> vector<8x32xf32>
    %14 = vector.broadcast %11 : vector<1x32xf32> to vector<8x32xf32>
    %15 = arith.addf %13, %14 : vector<8x32xf32>
    %16 = arith.truncf %15 : vector<8x32xf32> to vector<8x32xbf16>
    %cst_20 = arith.constant dense<0.000000e+00> : vector<8x64xf32>
    %17 = tpu.matmul %16, %3, %cst_20 {dimension_numbers = #tpu.dot_dimension_numbers<[1], [0], [0], [1], [0, 0, 1, 1], [], []>} : vector<8x32xbf16>, vector<32x64xbf16>, vector<8x64xf32> -> vector<8x64xf32>
    %18 = vector.broadcast %7 : vector<1x64xf32> to vector<8x64xf32>
    %19 = arith.subf %17, %18 : vector<8x64xf32>
    %cst_21 = arith.constant dense<0xFF800000> : vector<8xf32>
    %20 = vector.multi_reduction <maximumf>, %19, %cst_21 [1] : vector<8x64xf32> to vector<8xf32>
    %21 = vector.shape_cast %20 : vector<8xf32> to vector<8x1xf32>
    %22 = vector.broadcast %21 : vector<8x1xf32> to vector<8x64xf32>
    %23 = arith.subf %19, %22 : vector<8x64xf32>
    %24 = math.exp %23 : vector<8x64xf32>
    %cst_22 = arith.constant dense<0.000000e+00> : vector<8x64xf32>
    %25 = tpu.matmul %24, %12, %cst_22 {dimension_numbers = #tpu.dot_dimension_numbers<[1], [0], [0], [1], [0, 0, 1, 1], [], []>} : vector<8x64xf32>, vector<64x64xf32>, vector<8x64xf32> -> vector<8x64xf32>
    %cst_23 = arith.constant 1.000000e-30 : f32
    %26 = vector.broadcast %cst_23 : f32 to vector<8x64xf32>
    %27 = arith.maximumf %25, %26 : vector<8x64xf32>
    %28 = tpu.reciprocal %27 {approx = true} : vector<8x64xf32> -> vector<8x64xf32>
    %29 = arith.mulf %24, %28 : vector<8x64xf32>
    %30 = tpu.iota {dimensions = array<i32: 0>} : vector<8x8xi32>
    %31 = tpu.iota {dimensions = array<i32: 1>} : vector<8x8xi32>
    %32 = arith.cmpi eq, %30, %31 : vector<8x8xi32>
    %cst_24 = arith.constant 0.000000e+00 : f32
    %33 = vector.shape_cast %9 : vector<1x8xf32> to vector<1x8xf32>
    %34 = vector.broadcast %33 : vector<1x8xf32> to vector<8x8xf32>
    %35 = vector.broadcast %cst_24 : f32 to vector<8x8xf32>
    %36 = arith.select %32, %34, %35 : vector<8x8xi1>, vector<8x8xf32>
    %cst_25 = arith.constant dense<0.000000e+00> : vector<8xf32>
    %37 = vector.multi_reduction <add>, %36, %cst_25 [1] : vector<8x8xf32> to vector<8xf32>
    %38 = vector.shape_cast %37 : vector<8xf32> to vector<8x1xf32>
    %39 = vector.broadcast %38 : vector<8x1xf32> to vector<8x64xf32>
    %40 = arith.mulf %29, %39 : vector<8x64xf32>
    %cst_26 = arith.constant dense<0xFF800000> : vector<64xf32>
    %41 = vector.multi_reduction <maximumf>, %40, %cst_26 [0] : vector<8x64xf32> to vector<64xf32>
    %42 = vector.shape_cast %41 : vector<64xf32> to vector<1x64xf32>
    %43 = vector.extract_strided_slice %42 {offsets = [0, 0], sizes = [1, 16], strides = [1, 1]} : vector<1x64xf32> to vector<1x16xf32>
    %44 = vector.extract_strided_slice %42 {offsets = [0, 16], sizes = [1, 16], strides = [1, 1]} : vector<1x64xf32> to vector<1x16xf32>
    %45 = arith.addf %43, %44 : vector<1x16xf32>
    %46 = vector.extract_strided_slice %42 {offsets = [0, 32], sizes = [1, 16], strides = [1, 1]} : vector<1x64xf32> to vector<1x16xf32>
    %47 = arith.addf %45, %46 : vector<1x16xf32>
    %48 = vector.extract_strided_slice %42 {offsets = [0, 48], sizes = [1, 16], strides = [1, 1]} : vector<1x64xf32> to vector<1x16xf32>
    %49 = arith.addf %47, %48 : vector<1x16xf32>
    %cst_27 = arith.constant 0.000000e+00 : f32
    %50 = vector.broadcast %cst_27 : f32 to vector<1x112xf32>
    %51 = tpu.concatenate %49, %50 in 1 : vector<1x16xf32>, vector<1x112xf32> -> vector<1x128xf32>
    %c0_28 = arith.constant 0 : index
    %c0_29 = arith.constant 0 : index
    %c0_30 = arith.constant 0 : index
    %52 = vector.load %arg10[%c0_28, %c0_29, %c0_30] : memref<1x1x128xf32, #tpu.memory_space<vmem>>, vector<1x1x128xf32>
    %53 = vector.shape_cast %52 : vector<1x1x128xf32> to vector<1x128xf32>
    %54 = vector.shape_cast %51 : vector<1x128xf32> to vector<1x1x128xf32>
    tpu.vector_store %arg10[%c0_28, %c0_29, %c0_30], %54 {strides = array<i32>} : memref<1x1x128xf32, #tpu.memory_space<vmem>>, vector<1x1x128xf32>,
    %55 = arith.truncf %40 : vector<8x64xf32> to vector<8x64xbf16>
    %cst_31 = arith.constant dense<0.000000e+00> : vector<8x32xf32>
    %56 = tpu.matmul %55, %5, %cst_31 {dimension_numbers = #tpu.dot_dimension_numbers<[1], [0], [0], [1], [0, 0, 1, 1], [], []>} : vector<8x64xbf16>, vector<64x32xbf16>, vector<8x32xf32> -> vector<8x32xf32>
    %c0_32 = arith.constant 0 : index
    %c0_33 = arith.constant 0 : index
    %c0_34 = arith.constant 0 : index
    %57 = vector.load %arg9[%c0_32, %c0_33, %c0_34] : memref<1x8x32xf32, #tpu.memory_space<vmem>>, vector<1x8x32xf32>
    %58 = vector.shape_cast %57 : vector<1x8x32xf32> to vector<8x32xf32>
    %59 = vector.shape_cast %56 : vector<8x32xf32> to vector<1x8x32xf32>
    tpu.vector_store %arg9[%c0_32, %c0_33, %c0_34], %59 {strides = array<i32>} : memref<1x8x32xf32, #tpu.memory_space<vmem>>, vector<1x8x32xf32>,
    return
  }
  func.func @transform_0(%arg0: i32) -> (i32, i32, i32) {
    %c0_i32 = arith.constant 0 : i32
    %c0_i32_0 = arith.constant 0 : i32
    %c0_i32_1 = arith.constant 0 : i32
    return %arg0, %c0_i32, %c0_i32_0 : i32, i32, i32
  }
  func.func @transform_1(%arg0: i32) -> (i32, i32, i32) {
    %c0_i32 = arith.constant 0 : i32
    %c0_i32_0 = arith.constant 0 : i32
    %c0_i32_1 = arith.constant 0 : i32
    return %arg0, %c0_i32, %c0_i32_0 : i32, i32, i32
  }
  func.func @transform_2(%arg0: i32) -> (i32, i32, i32) {
    %c0_i32 = arith.constant 0 : i32
    %c0_i32_0 = arith.constant 0 : i32
    %c0_i32_1 = arith.constant 0 : i32
    return %arg0, %c0_i32, %c0_i32_0 : i32, i32, i32
  }
  func.func @transform_3(%arg0: i32) -> (i32, i32, i32) {
    %c0_i32 = arith.constant 0 : i32
    %c0_i32_0 = arith.constant 0 : i32
    %c0_i32_1 = arith.constant 0 : i32
    return %arg0, %c0_i32, %c0_i32_0 : i32, i32, i32
  }
  func.func @transform_4(%arg0: i32) -> (i32, i32, i32) {
    %c0_i32 = arith.constant 0 : i32
    %c0_i32_0 = arith.constant 0 : i32
    %c0_i32_1 = arith.constant 0 : i32
    return %arg0, %c0_i32, %c0_i32_0 : i32, i32, i32
  }
  func.func @transform_5(%arg0: i32) -> (i32, i32) {
    %c0_i32 = arith.constant 0 : i32
    %c0_i32_0 = arith.constant 0 : i32
    %c0_i32_1 = arith.constant 0 : i32
    return %c0_i32, %c0_i32_0 : i32, i32
  }
  func.func @transform_6(%arg0: i32) -> (i32, i32) {
    %c0_i32 = arith.constant 0 : i32
    %c0_i32_0 = arith.constant 0 : i32
    %c0_i32_1 = arith.constant 0 : i32
    return %c0_i32, %c0_i32_0 : i32, i32
  }
  func.func @transform_7(%arg0: i32) -> (i32, i32) {
    %c0_i32 = arith.constant 0 : i32
    %c0_i32_0 = arith.constant 0 : i32
    %c0_i32_1 = arith.constant 0 : i32
    return %c0_i32, %c0_i32_0 : i32, i32
  }
  func.func @transform_8(%arg0: i32) -> (i32, i32, i32) {
    %c0_i32 = arith.constant 0 : i32
    %c0_i32_0 = arith.constant 0 : i32
    %c0_i32_1 = arith.constant 0 : i32
    return %arg0, %c0_i32, %c0_i32_0 : i32, i32, i32
  }
  func.func @transform_9(%arg0: i32) -> (i32, i32, i32) {
    %c0_i32 = arith.constant 0 : i32
    %c0_i32_0 = arith.constant 0 : i32
    %c0_i32_1 = arith.constant 0 : i32
    return %arg0, %c0_i32, %c0_i32_0 : i32, i32, i32
  }
}

</mosaic_0001>

<llo_original>
// kernel: tpu_custom_call.1
$region0: #{tpu_custom_call.1}
  #allocation0 [shape = 'u32[]', space=smem, size = 0x4, offset = 0x4, fixed_abs, tag = 'smem constant byte address 0x4 - core index']
  #allocation1 [shape = 'u32[144,128]{1,0:T(1,128)}', space=vmem, size = 0x12000, scoped, tag = 'internal scratch']
  %s0 = inlined_call_operand.vmem [shape: bf16[2,8,32], index: 0, kind: input, shape index: {}]
  %s1 = inlined_call_operand.vmem [shape: f32[2,1,8], index: 1, kind: input, shape index: {}]
  %s2 = inlined_call_operand.vmem [shape: bf16[2,32,64], index: 2, kind: input, shape index: {}]
  %s3 = inlined_call_operand.vmem [shape: bf16[2,64,32], index: 3, kind: input, shape index: {}]
  %s4 = inlined_call_operand.hbm [shape: f32[2,1,64], index: 4, kind: input, shape index: {}]
  %s5 = inlined_call_operand.vmem [shape: bf16[32,32], index: 5, kind: input, shape index: {}]
  %s6 = inlined_call_operand.hbm [shape: f32[1,32], index: 6, kind: input, shape index: {}]
  %s7 = inlined_call_operand.vmem [shape: f32[64,64], index: 7, kind: input, shape index: {}]
  %s8 = inlined_call_operand.hbm [shape: f32[2,8,32], index: 8, kind: output, shape index: {0}]
  %s9 = inlined_call_operand.hbm [shape: f32[2,1,128], index: 9, kind: output, shape index: {1}]
  %10 = xla_tuple %s8, %s9
  %s11 = sld [smem:[#allocation0]]
  $region81: #{tpu_custom_call.1} parent=0
    _
  %s13 = ssub.s32 1, %s11
  %s14 = scalar_select 0, %s13, %s11
  $region1: #{tpu_custom_call.1} parent=0
    #allocation2 [shape = 'u8[1024]{0}', space=vmem, size = 0x400, scoped, tag = 'input window, operand 4']
    #allocation3 [shape = 's32[2]{0}', space=sflag, size = 0x8, scoped, tag = 'scoped memory for tpu_custom_call.1']
    #allocation4 [shape = 's32[2]{0}', space=sflag, size = 0x8, scoped, tag = 'scoped memory for tpu_custom_call.1']
    #allocation5 [shape = 'u8[512]{0}', space=vmem, size = 0x400, scoped, tag = 'input window, operand 6, single buffered']
    #allocation6 [shape = 's32[1]{0}', space=sflag, size = 0x4, scoped, tag = 'scoped memory for tpu_custom_call.1']
    #allocation7 [shape = 'u8[8192]{0}', space=vmem, size = 0x2000, scoped, tag = 'output window, operand 0']
    #allocation8 [shape = 'u8[1024]{0}', space=vmem, size = 0x400, scoped, tag = 'output window, operand 1']
    #allocation9 [shape = 's32[2]{0}', space=sflag, size = 0x8, scoped, tag = 'scoped memory for tpu_custom_call.1']
    %15 = vsyncpa [#allocation3], 0
    %s16 = scalar_lea.sflag [#allocation3], 1
    %17 = vsyncpa %s16, 0
    %18 = vsyncpa [#allocation6], 0
    %19 = vsyncpa [#allocation4], 0
    %s20 = scalar_lea.sflag [#allocation4], 1
    %21 = vsyncpa %s20, 0
    %22 = vsyncpa [#allocation9], 0
    %s23 = scalar_lea.sflag [#allocation9], 1
    %24 = vsyncpa %s23, 0
    loop: start=0, step=1, limit=4
    $region2: #{tpu_custom_call.1} parent=1 // loop_pre_header
      _
    $region3: #{tpu_custom_call.1} parent=1 // loop_header
      %s26 = sphi 0, %s30
      %p27 = scmp.ge.s32.totalorder %s26, 4
      %s36 = sphi 0, %s38
      %s39 = sphi 0, %s36
      %s40 = sphi 0, %s39
      %s56 = sphi 0, %s40
      %s62 = sphi 0, %s64
      %s65 = sphi 0, %s62
      %s66 = sphi 0, %s65
      %s82 = sphi 0, %s66
      %s88 = sphi 0, %s90
      %s91 = sphi 0, %s88
      %s92 = sphi 0, %s91
      %s108 = sphi 0, %s92
      %s114 = sphi 0, %s116
      %s117 = sphi 0, %s114
      %s118 = sphi 0, %s117
      %s134 = sphi 0, %s118
      %s140 = sphi 0, %s142
      %s143 = sphi 0, %s140
      %s144 = sphi 0, %s143
      %s160 = sphi 0, %s144
      %s164 = sphi 0, %s164
      %s166 = sphi 0, %s164
      %s167 = sphi 0, %s166
      %s181 = sphi 0, %s167
      %s185 = sphi 0, %s185
      %s187 = sphi 0, %s185
      %s188 = sphi 0, %s187
      %s202 = sphi 0, %s188
      %s206 = sphi 0, %s206
      %s208 = sphi 0, %s206
      %s209 = sphi 0, %s208
      %s223 = sphi 0, %s209
      %s229 = sphi 0, %s231
      %s232 = sphi 0, %s229
      %s233 = sphi 0, %s232
      %s249 = sphi 0, %s233
      %s255 = sphi 0, %s257
      %s258 = sphi 0, %s255
      %s259 = sphi 0, %s258
      %s275 = sphi 0, %s259
    $region4: #{tpu_custom_call.1} parent=1 // loop_header_branch
      %29 = sbr.rel (%p27) target = $region8
    $region5: #{tpu_custom_call.1} parent=1 // loop_body
      %s31 = ssub.s32 %s26, 1
      %s32 = ssub.s32 %s26, 2
      %s33 = sadd.s32 %s26, 1
      %s34 = ssub.s32 %s26, %s33
      %p35 = scmp.eq.s32.totalorder %s34, 0
      %s37 = sadd.s32 %s36, 1
      %s38 = scalar_select %p35, %s36, %s37
      %p41 = pneg %p35
      %p42 = scmp.eq.s32.totalorder %s26, 1
      %p43 = por %p41, %p42
      %p44 = scmp.ne.s32.totalorder %s36, %s39
      %p45 = scmp.eq.s32.totalorder %s26, 0
      %p46 = por %p44, %p45
      %p47 = scmp.ne.s32.totalorder %s36, %s39
      %p48 = scmp.eq.s32.totalorder %s31, 1
      %p49 = por %p47, %p48
      %p50 = scmp.ne.s32.totalorder %s39, %s40
      %p51 = scmp.eq.s32.totalorder %s31, 0
      %p52 = por %p50, %p51
      %p53 = scmp.ne.s32.totalorder %s39, %s40
      %p54 = scmp.eq.s32.totalorder %s32, 1
      %p55 = por %p53, %p54
      %p57 = scmp.ne.s32.totalorder %s40, %s56
      %p58 = scmp.eq.s32.totalorder %s32, 0
      %p59 = por %p57, %p58
      %s60 = ssub.s32 %s26, %s33
      %p61 = scmp.eq.s32.totalorder %s60, 0
      %s63 = sadd.s32 %s62, 1
      %s64 = scalar_select %p61, %s62, %s63
      %p67 = pneg %p61
      %p68 = scmp.eq.s32.totalorder %s26, 1
      %p69 = por %p67, %p68
      %p70 = scmp.ne.s32.totalorder %s62, %s65
      %p71 = scmp.eq.s32.totalorder %s26, 0
      %p72 = por %p70, %p71
      %p73 = scmp.ne.s32.totalorder %s62, %s65
      %p74 = scmp.eq.s32.totalorder %s31, 1
      %p75 = por %p73, %p74
      %p76 = scmp.ne.s32.totalorder %s65, %s66
      %p77 = scmp.eq.s32.totalorder %s31, 0
      %p78 = por %p76, %p77
      %p79 = scmp.ne.s32.totalorder %s65, %s66
      %p80 = scmp.eq.s32.totalorder %s32, 1
      %p81 = por %p79, %p80
      %p83 = scmp.ne.s32.totalorder %s66, %s82
      %p84 = scmp.eq.s32.totalorder %s32, 0
      %p85 = por %p83, %p84
      %s86 = ssub.s32 %s26, %s33
      %p87 = scmp.eq.s32.totalorder %s86, 0
      %s89 = sadd.s32 %s88, 1
      %s90 = scalar_select %p87, %s88, %s89
      %p93 = pneg %p87
      %p94 = scmp.eq.s32.totalorder %s26, 1
      %p95 = por %p93, %p94
      %p96 = scmp.ne.s32.totalorder %s88, %s91
      %p97 = scmp.eq.s32.totalorder %s26, 0
      %p98 = por %p96, %p97
      %p99 = scmp.ne.s32.totalorder %s88, %s91
      %p100 = scmp.eq.s32.totalorder %s31, 1
      %p101 = por %p99, %p100
      %p102 = scmp.ne.s32.totalorder %s91, %s92
      %p103 = scmp.eq.s32.totalorder %s31, 0
      %p104 = por %p102, %p103
      %p105 = scmp.ne.s32.totalorder %s91, %s92
      %p106 = scmp.eq.s32.totalorder %s32, 1
      %p107 = por %p105, %p106
      %p109 = scmp.ne.s32.totalorder %s92, %s108
      %p110 = scmp.eq.s32.totalorder %s32, 0
      %p111 = por %p109, %p110
      %s112 = ssub.s32 %s26, %s33
      %p113 = scmp.eq.s32.totalorder %s112, 0
      %s115 = sadd.s32 %s114, 1
      %s116 = scalar_select %p113, %s114, %s115
      %p119 = pneg %p113
      %p120 = scmp.eq.s32.totalorder %s26, 1
      %p121 = por %p119, %p120
      %p122 = scmp.ne.s32.totalorder %s114, %s117
      %p123 = scmp.eq.s32.totalorder %s26, 0
      %p124 = por %p122, %p123
      %p125 = scmp.ne.s32.totalorder %s114, %s117
      %p126 = scmp.eq.s32.totalorder %s31, 1
      %p127 = por %p125, %p126
      %p128 = scmp.ne.s32.totalorder %s117, %s118
      %p129 = scmp.eq.s32.totalorder %s31, 0
      %p130 = por %p128, %p129
      %p131 = scmp.ne.s32.totalorder %s117, %s118
      %p132 = scmp.eq.s32.totalorder %s32, 1
      %p133 = por %p131, %p132
      %p135 = scmp.ne.s32.totalorder %s118, %s134
      %p136 = scmp.eq.s32.totalorder %s32, 0
      %p137 = por %p135, %p136
      %s138 = ssub.s32 %s26, %s33
      %p139 = scmp.eq.s32.totalorder %s138, 0
      %s141 = sadd.s32 %s140, 1
      %s142 = scalar_select %p139, %s140, %s141
      %p145 = pneg %p139
      %p146 = scmp.eq.s32.totalorder %s26, 1
      %p147 = por %p145, %p146
      %p148 = scmp.ne.s32.totalorder %s140, %s143
      %p149 = scmp.eq.s32.totalorder %s26, 0
      %p150 = por %p148, %p149
      %p151 = scmp.ne.s32.totalorder %s140, %s143
      %p152 = scmp.eq.s32.totalorder %s31, 1
      %p153 = por %p151, %p152
      %p154 = scmp.ne.s32.totalorder %s143, %s144
      %p155 = scmp.eq.s32.totalorder %s31, 0
      %p156 = por %p154, %p155
      %p157 = scmp.ne.s32.totalorder %s143, %s144
      %p158 = scmp.eq.s32.totalorder %s32, 1
      %p159 = por %p157, %p158
      %p161 = scmp.ne.s32.totalorder %s144, %s160
      %p162 = scmp.eq.s32.totalorder %s32, 0
      %p163 = por %p161, %p162
      %s165 = sadd.s32 %s164, 1
      %p168 = scmp.eq.s32.totalorder %s26, 1
      %p169 = scmp.ne.s32.totalorder %s164, %s166
      %p170 = scmp.eq.s32.totalorder %s26, 0
      %p171 = por %p169, %p170
      %p172 = scmp.ne.s32.totalorder %s164, %s166
      %p173 = scmp.eq.s32.totalorder %s31, 1
      %p174 = por %p172, %p173
      %p175 = scmp.ne.s32.totalorder %s166, %s167
      %p176 = scmp.eq.s32.totalorder %s31, 0
      %p177 = por %p175, %p176
      %p178 = scmp.ne.s32.totalorder %s166, %s167
      %p179 = scmp.eq.s32.totalorder %s32, 1
      %p180 = por %p178, %p179
      %p182 = scmp.ne.s32.totalorder %s167, %s181
      %p183 = scmp.eq.s32.totalorder %s32, 0
      %p184 = por %p182, %p183
      %s186 = sadd.s32 %s185, 1
      %p189 = scmp.eq.s32.totalorder %s26, 1
      %p190 = scmp.ne.s32.totalorder %s185, %s187
      %p191 = scmp.eq.s32.totalorder %s26, 0
      %p192 = por %p190, %p191
      %p193 = scmp.ne.s32.totalorder %s185, %s187
      %p194 = scmp.eq.s32.totalorder %s31, 1
      %p195 = por %p193, %p194
      %p196 = scmp.ne.s32.totalorder %s187, %s188
      %p197 = scmp.eq.s32.totalorder %s31, 0
      %p198 = por %p196, %p197
      %p199 = scmp.ne.s32.totalorder %s187, %s188
      %p200 = scmp.eq.s32.totalorder %s32, 1
      %p201 = por %p199, %p200
      %p203 = scmp.ne.s32.totalorder %s188, %s202
      %p204 = scmp.eq.s32.totalorder %s32, 0
      %p205 = por %p203, %p204
      %s207 = sadd.s32 %s206, 1
      %p210 = scmp.eq.s32.totalorder %s26, 1
      %p211 = scmp.ne.s32.totalorder %s206, %s208
      %p212 = scmp.eq.s32.totalorder %s26, 0
      %p213 = por %p211, %p212
      %p214 = scmp.ne.s32.totalorder %s206, %s208
      %p215 = scmp.eq.s32.totalorder %s31, 1
      %p216 = por %p214, %p215
      %p217 = scmp.ne.s32.totalorder %s208, %s209
      %p218 = scmp.eq.s32.totalorder %s31, 0
      %p219 = por %p217, %p218
      %p220 = scmp.ne.s32.totalorder %s208, %s209
      %p221 = scmp.eq.s32.totalorder %s32, 1
      %p222 = por %p220, %p221
      %p224 = scmp.ne.s32.totalorder %s209, %s223
      %p225 = scmp.eq.s32.totalorder %s32, 0
      %p226 = por %p224, %p225
      %s227 = ssub.s32 %s26, %s33
      %p228 = scmp.eq.s32.totalorder %s227, 0
      %s230 = sadd.s32 %s229, 1
      %s231 = scalar_select %p228, %s229, %s230
      %p234 = pneg %p228
      %p235 = scmp.eq.s32.totalorder %s26, 1
      %p236 = por %p234, %p235
      %p237 = scmp.ne.s32.totalorder %s229, %s232
      %p238 = scmp.eq.s32.totalorder %s26, 0
      %p239 = por %p237, %p238
      %p240 = scmp.ne.s32.totalorder %s229, %s232
      %p241 = scmp.eq.s32.totalorder %s31, 1
      %p242 = por %p240, %p241
      %p243 = scmp.ne.s32.totalorder %s232, %s233
      %p244 = scmp.eq.s32.totalorder %s31, 0
      %p245 = por %p243, %p244
      %p246 = scmp.ne.s32.totalorder %s232, %s233
      %p247 = scmp.eq.s32.totalorder %s32, 1
      %p248 = por %p246, %p247
      %p250 = scmp.ne.s32.totalorder %s233, %s249
      %p251 = scmp.eq.s32.totalorder %s32, 0
      %p252 = por %p250, %p251
      %s253 = ssub.s32 %s26, %s33
      %p254 = scmp.eq.s32.totalorder %s253, 0
      %s256 = sadd.s32 %s255, 1
      %s257 = scalar_select %p254, %s255, %s256
      %p260 = pneg %p254
      %p261 = scmp.eq.s32.totalorder %s26, 1
      %p262 = por %p260, %p261
      %p263 = scmp.ne.s32.totalorder %s255, %s258
      %p264 = scmp.eq.s32.totalorder %s26, 0
      %p265 = por %p263, %p264
      %p266 = scmp.ne.s32.totalorder %s255, %s258
      %p267 = scmp.eq.s32.totalorder %s31, 1
      %p268 = por %p266, %p267
      %p269 = scmp.ne.s32.totalorder %s258, %s259
      %p270 = scmp.eq.s32.totalorder %s31, 0
      %p271 = por %p269, %p270
      %p272 = scmp.ne.s32.totalorder %s258, %s259
      %p273 = scmp.eq.s32.totalorder %s32, 1
      %p274 = por %p272, %p273
      %p276 = scmp.ne.s32.totalorder %s259, %s275
      %p277 = scmp.eq.s32.totalorder %s32, 0
      %p278 = por %p276, %p277
      %p279 = scmp.le.s32.totalorder 1, %s26
      %p280 = scmp.lt.s32.totalorder %s26, 3
      %p281 = pnand %p279, %p280
      %p282 = pneg %p281
      // Predicated region
      $region9: #{tpu_custom_call.1} parent=5 // pred_check
        _
      $region10: #{tpu_custom_call.1} parent=5 // pred_check_branch
        %284 = sbr.rel (%p281) target = $region12
      $region11: #{tpu_custom_call.1} parent=5 // pred_region
        %s285 = ssub.s32 %s26, 1
        // Predicated region
        $region13: #{tpu_custom_call.1} parent=11 // pred_check
          %p286 = pneg %p177
        $region14: #{tpu_custom_call.1} parent=11 // pred_check_branch
          %288 = sbr.rel (%p286) target = $region16
        $region15: #{tpu_custom_call.1} parent=11 // pred_region
          _
        $region16: #{tpu_custom_call.1} parent=11 // pred_fallthru
          _
        // Predicated region
        $region17: #{tpu_custom_call.1} parent=11 // pred_check
          %p289 = pneg %p198
        $region18: #{tpu_custom_call.1} parent=11 // pred_check_branch
          %291 = sbr.rel (%p289) target = $region20
        $region19: #{tpu_custom_call.1} parent=11 // pred_region
          %s293 = ssub.s32 16, 16
          %294 = vsyncadd [#allocation6], %s293
          %s296 = sshll.u32 [#allocation5], 4
          %s297 = int_to_ptr.vmem [resolvable:$true] %s296
          %299 = dma.hbm_to_vmem [thread:$0]  %s6, 16, %s297, [#allocation6]
        $region20: #{tpu_custom_call.1} parent=11 // pred_fallthru
          _
        // Predicated region
        $region21: #{tpu_custom_call.1} parent=11 // pred_check
          %p300 = pneg %p219
        $region22: #{tpu_custom_call.1} parent=11 // pred_check_branch
          %302 = sbr.rel (%p300) target = $region24
        $region23: #{tpu_custom_call.1} parent=11 // pred_region
          _
        $region24: #{tpu_custom_call.1} parent=11 // pred_fallthru
          _
      $region12: #{tpu_custom_call.1} parent=5 // pred_fallthru
        _
      %p303 = scmp.lt.s32.totalorder %s26, 2
      // Predicated region
      $region25: #{tpu_custom_call.1} parent=5 // pred_check
        %p304 = pneg %p303
      $region26: #{tpu_custom_call.1} parent=5 // pred_check_branch
        %306 = sbr.rel (%p304) target = $region28
      $region27: #{tpu_custom_call.1} parent=5 // pred_region
        // Predicated region
        $region29: #{tpu_custom_call.1} parent=27 // pred_check
          %p307 = pneg %p46
        $region30: #{tpu_custom_call.1} parent=27 // pred_check_branch
          %309 = sbr.rel (%p307) target = $region32
        $region31: #{tpu_custom_call.1} parent=27 // pred_region
          %p310 = scmp.lt.s32.totalorder %s26, 1
          %s311 = scalar_select %p310, %s26, 1
          %s312 = smul.addr %s311, 4
          %s313 = scalar_lea.vmem %s0, %s312
        $region32: #{tpu_custom_call.1} parent=27 // pred_fallthru
          _
        // Predicated region
        $region33: #{tpu_custom_call.1} parent=27 // pred_check
          %p314 = pneg %p72
        $region34: #{tpu_custom_call.1} parent=27 // pred_check_branch
          %316 = sbr.rel (%p314) target = $region36
        $region35: #{tpu_custom_call.1} parent=27 // pred_region
          %p317 = scmp.lt.s32.totalorder %s26, 1
          %s318 = scalar_select %p317, %s26, 1
          %s319 = scalar_lea.vmem %s1, %s318
        $region36: #{tpu_custom_call.1} parent=27 // pred_fallthru
          _
        // Predicated region
        $region37: #{tpu_custom_call.1} parent=27 // pred_check
          %p320 = pneg %p98
        $region38: #{tpu_custom_call.1} parent=27 // pred_check_branch
          %322 = sbr.rel (%p320) target = $region40
        $region39: #{tpu_custom_call.1} parent=27 // pred_region
          %p323 = scmp.lt.s32.totalorder %s26, 1
          %s324 = scalar_select %p323, %s26, 1
          %s325 = smul.addr %s324, 4
          %s326 = smul.addr %s325, 4
          %s327 = scalar_lea.vmem %s2, %s326
        $region40: #{tpu_custom_call.1} parent=27 // pred_fallthru
          _
        // Predicated region
        $region41: #{tpu_custom_call.1} parent=27 // pred_check
          %p328 = pneg %p124
        $region42: #{tpu_custom_call.1} parent=27 // pred_check_branch
          %330 = sbr.rel (%p328) target = $region44
        $region43: #{tpu_custom_call.1} parent=27 // pred_region
          %p331 = scmp.lt.s32.totalorder %s26, 1
          %s332 = scalar_select %p331, %s26, 1
          %s333 = smul.addr %s332, 8
          %s334 = smul.addr %s333, 4
          %s335 = scalar_lea.vmem %s3, %s334
        $region44: #{tpu_custom_call.1} parent=27 // pred_fallthru
          _
        // Predicated region
        $region45: #{tpu_custom_call.1} parent=27 // pred_check
          %p336 = pneg %p150
        $region46: #{tpu_custom_call.1} parent=27 // pred_check_branch
          %338 = sbr.rel (%p336) target = $region48
        $region47: #{tpu_custom_call.1} parent=27 // pred_region
          %s339 = sand.u32 %s140, 1
          %s340 = scalar_lea.sflag [#allocation3], %s339
          %s341 = sand.u32 %s140, 1
          %s342 = scalar_lea.vmem [#allocation2], %s341
          %s344 = ssub.s32 16, 16
          %345 = vsyncadd %s340, %s344
          %s346 = smul.addr %s26, 16
          %s347 = scalar_lea.hbm %s4, %s346
          %s349 = sshll.u32 %s342, 4
          %s350 = int_to_ptr.vmem [resolvable:$true] %s349
          %352 = dma.hbm_to_vmem [thread:$0]  %s347, 16, %s350, %s340
        $region48: #{tpu_custom_call.1} parent=27 // pred_fallthru
          _
      $region28: #{tpu_custom_call.1} parent=5 // pred_fallthru
        _
      %p353 = scmp.le.s32.totalorder 1, %s26
      %p354 = scmp.lt.s32.totalorder %s26, 3
      %p355 = pnand %p353, %p354
      %p356 = pneg %p355
      // Predicated region
      $region49: #{tpu_custom_call.1} parent=5 // pred_check
        _
      $region50: #{tpu_custom_call.1} parent=5 // pred_check_branch
        %358 = sbr.rel (%p355) target = $region52
      $region51: #{tpu_custom_call.1} parent=5 // pred_region
        %s359 = ssub.s32 %s26, 1
        %s360 = sand.u32 %s143, 1
        %s361 = scalar_lea.sflag [#allocation3], %s360
        %s362 = sand.u32 %s143, 1
        %s363 = scalar_lea.vmem [#allocation2], %s362
        // Predicated region
        $region53: #{tpu_custom_call.1} parent=51 // pred_check
          %p364 = pneg %p156
        $region54: #{tpu_custom_call.1} parent=51 // pred_check_branch
          %366 = sbr.rel (%p364) target = $region56
        $region55: #{tpu_custom_call.1} parent=51 // pred_region
          %367 = dma.done %s361, 16
        $region56: #{tpu_custom_call.1} parent=51 // pred_fallthru
          _
        // Predicated region
        $region57: #{tpu_custom_call.1} parent=51 // pred_check
          %p368 = pneg %p198
        $region58: #{tpu_custom_call.1} parent=51 // pred_check_branch
          %370 = sbr.rel (%p368) target = $region60
        $region59: #{tpu_custom_call.1} parent=51 // pred_region
          %371 = dma.done [#allocation6], 16
        $region60: #{tpu_custom_call.1} parent=51 // pred_fallthru
          _
        %p372 = scmp.lt.s32.totalorder %s31, 1
        %s373 = scalar_select %p372, %s31, 1
        %s374 = smul.addr %s373, 4
        %s375 = scalar_lea.vmem %s0, %s374
        %p376 = pneg %p52
        %p377 = pneg %p49
        %p378 = scmp.lt.s32.totalorder %s31, 1
        %s379 = scalar_select %p378, %s31, 1
        %s380 = scalar_lea.vmem %s1, %s379
        %p381 = pneg %p78
        %p382 = pneg %p75
        %p383 = scmp.lt.s32.totalorder %s31, 1
        %s384 = scalar_select %p383, %s31, 1
        %s385 = smul.addr %s384, 4
        %s386 = smul.addr %s385, 4
        %s387 = scalar_lea.vmem %s2, %s386
        %p388 = pneg %p104
        %p389 = pneg %p101
        %p390 = scmp.lt.s32.totalorder %s31, 1
        %s391 = scalar_select %p390, %s31, 1
        %s392 = smul.addr %s391, 8
        %s393 = smul.addr %s392, 4
        %s394 = scalar_lea.vmem %s3, %s393
        %p395 = pneg %p130
        %p396 = pneg %p127
        %s397 = sand.u32 %s143, 1
        %s398 = scalar_lea.sflag [#allocation3], %s397
        %s399 = sand.u32 %s143, 1
        %s400 = scalar_lea.vmem [#allocation2], %s399
        %p401 = pneg %p156
        %p402 = pneg %p153
        %p403 = pneg %p177
        %p404 = pneg %p174
        %p405 = pneg %p198
        %p406 = pneg %p195
        %p407 = pneg %p219
        %p408 = pneg %p216
        %p409 = pneg %p245
        %p410 = pneg %p242
        %s411 = sand.u32 %s232, 1
        %s412 = scalar_lea.sflag [#allocation4], %s411
        %s413 = sand.u32 %s232, 1
        %s414 = smul.addr %s413, 8
        %s415 = scalar_lea.vmem [#allocation7], %s414
        %p416 = pneg %p271
        %p417 = pneg %p268
        %s418 = sand.u32 %s258, 1
        %s419 = scalar_lea.sflag [#allocation9], %s418
        %s420 = sand.u32 %s258, 1
        %s421 = scalar_lea.vmem [#allocation8], %s420
        %p422 = scmp.lt.s32.totalorder %s31, 1
        %s423 = scalar_select %p422, %s31, 1
        %s424 = smul.addr %s423, 4
        %s425 = scalar_lea.vmem %s0, %s424
        %p426 = scmp.lt.s32.totalorder %s31, 1
        %s427 = scalar_select %p426, %s31, 1
        %s428 = scalar_lea.vmem %s1, %s427
        %p429 = scmp.lt.s32.totalorder %s31, 1
        %s430 = scalar_select %p429, %s31, 1
        %s431 = smul.addr %s430, 4
        %s432 = smul.addr %s431, 4
        %s433 = scalar_lea.vmem %s2, %s432
        %p434 = scmp.lt.s32.totalorder %s31, 1
        %s435 = scalar_select %p434, %s31, 1
        %s436 = smul.addr %s435, 8
        %s437 = smul.addr %s436, 4
        %s438 = scalar_lea.vmem %s3, %s437
        %v440 = vld [vmem:[%s425] sm:$0xf]
        %v441 = vld [vmem:[%s433] sm:$0xf]
        %v442 = vld [vmem:[%s433 + $0x4] sm:$0xf]
        %v443 = vld [vmem:[%s433 + $0x8] sm:$0xf]
        %v444 = vld [vmem:[%s433 + $0xc] sm:$0xf]
        %v445 = vld [vmem:[%s438] sm:$0xf]
        %v446 = vld [vmem:[%s438 + $0x4] sm:$0xf]
        %v447 = vld [vmem:[%s438 + $0x8] sm:$0xf]
        %v448 = vld [vmem:[%s438 + $0xc] sm:$0xf]
        %v449 = vld [vmem:[%s438 + $0x10] sm:$0xf]
        %v450 = vld [vmem:[%s438 + $0x14] sm:$0xf]
        %v451 = vld [vmem:[%s438 + $0x18] sm:$0xf]
        %v452 = vld [vmem:[%s438 + $0x1c] sm:$0xf]
        %v453 = vld [vmem:[%s363] sm:$0x1]
        %v454 = vld [vmem:[%s428] sm:$0x1]
        %v455 = vld [vmem:[%s5] sm:$0xf]
        %v456 = vld [vmem:[%s5 + $0x4] sm:$0xf]
        %v457 = vld [vmem:[%s5 + $0x8] sm:$0xf]
        %v458 = vld [vmem:[%s5 + $0xc] sm:$0xf]
        %v459 = vld [vmem:[#allocation5] sm:$0x1]
        %v460 = vld [vmem:[%s7] sm:$0xff]
        %v461 = vld [vmem:[%s7 + $0x8] sm:$0xff]
        %v462 = vld [vmem:[%s7 + $0x10] sm:$0xff]
        %v463 = vld [vmem:[%s7 + $0x18] sm:$0xff]
        %v464 = vld [vmem:[%s7 + $0x20] sm:$0xff]
        %v465 = vld [vmem:[%s7 + $0x28] sm:$0xff]
        %v466 = vld [vmem:[%s7 + $0x30] sm:$0xff]
        %v467 = vld [vmem:[%s7 + $0x38] sm:$0xff]
        %v469 = vlaneseq
        %v470 = vshrl.u32 %v469, 7
        %v471 = vsub.s32 0, %v470
        %v472 = vrot.slane %v459, %v471
        %v478 = vunpack.c.l.b16 %v455
        %v479 = vunpack.c.l.b16 %v456
        %v480 = vunpack.c.l.b16 %v457
        %v481 = vunpack.c.l.b16 %v458
        %v482 = vpack.c.b16 %v479, %v478
        %v483 = vpack.c.b16 %v481, %v480
        %vm486 = vcmask 261120
        %v488 = vsel %vm486, %v440, 0
        %490 = vmatprep.subr.bf16.mxu0 0
        %491 = vmatpush1.bf16.msra.mxu0 %v482
        %492 = vmatprep.subr.bf16.mxu0 0
        %493 = vmatpush1.bf16.msra.mxu0 %v483
        %494 = vmatprep.subr.bf16.mxu0 0
        %495 = vmatpush1.bf16.msra.mxu0 0
        %496 = vmatprep.subr.bf16.mxu0 0
        %497 = vmatpush1.bf16.msra.mxu0 0
        %498 = vmatprep.subr.bf16.mxu0 0
        %499 = vmatpush1.bf16.msra.mxu0 0
        %500 = vmatprep.subr.bf16.mxu0 0
        %501 = vmatpush1.bf16.msra.mxu0 0
        %502 = vmatprep.subr.bf16.mxu0 0
        %503 = vmatpush1.bf16.msra.mxu0 0
        %504 = vmatprep.subr.bf16.mxu0 0
        %505 = vmatpush1.bf16.msra.mxu0 0
        %506 = vmatprep.subr.bf16.mxu0 0
        %507 = vmatpush1.bf16.msra.mxu0 0
        %508 = vmatprep.subr.bf16.mxu0 0
        %509 = vmatpush1.bf16.msra.mxu0 0
        %510 = vmatprep.subr.bf16.mxu0 0
        %511 = vmatpush1.bf16.msra.mxu0 0
        %512 = vmatprep.subr.bf16.mxu0 0
        %513 = vmatpush1.bf16.msra.mxu0 0
        %514 = vmatprep.subr.bf16.mxu0 0
        %515 = vmatpush1.bf16.msra.mxu0 0
        %516 = vmatprep.subr.bf16.mxu0 0
        %517 = vmatpush1.bf16.msra.mxu0 0
        %518 = vmatprep.subr.bf16.mxu0 0
        %519 = vmatpush1.bf16.msra.mxu0 0
        %520 = vmatprep.subr.bf16.mxu0 0
        %521 = vmatpush1.bf16.msra.mxu0 0
        %522 = vmatprep.mubr.bf16.mxu0 0
        %523 = vmatmul.mubr.bf16.gmra.mrb[0].mxu0 %v488
        %v524 = vpop.f32.mrb[0].mxu0
        %v525 = vadd.f32 %v472, %v524
        %v526 = vpop.f32.mrb[0].mxu0
        %v527 = vpop.f32.mrb[0].mxu0
        %v528 = vpop.f32.mrb[0].mxu0
        %529 = vdwg.mxu0
        %v530 = vpack.c.bf16 %v525, %v525
        %v535 = vunpack.c.l.b16 %v441
        %v536 = vunpack.c.l.b16 %v442
        %v537 = vunpack.c.l.b16 %v443
        %v538 = vunpack.c.l.b16 %v444
        %v539 = vpack.c.b16 %v536, %v535
        %v540 = vpack.c.b16 %v538, %v537
        %v544 = vsel %vm486, %v530, 0
        %546 = vmatprep.subr.bf16.mxu0 0
        %547 = vmatpush1.bf16.msra.mxu0 %v539
        %548 = vmatprep.subr.bf16.mxu0 0
        %549 = vmatpush1.bf16.msra.mxu0 %v540
        %550 = vmatprep.subr.bf16.mxu0 0
        %551 = vmatpush1.bf16.msra.mxu0 0
        %552 = vmatprep.subr.bf16.mxu0 0
        %553 = vmatpush1.bf16.msra.mxu0 0
        %554 = vmatprep.subr.bf16.mxu0 0
        %555 = vmatpush1.bf16.msra.mxu0 0
        %556 = vmatprep.subr.bf16.mxu0 0
        %557 = vmatpush1.bf16.msra.mxu0 0
        %558 = vmatprep.subr.bf16.mxu0 0
        %559 = vmatpush1.bf16.msra.mxu0 0
        %560 = vmatprep.subr.bf16.mxu0 0
        %561 = vmatpush1.bf16.msra.mxu0 0
        %562 = vmatprep.subr.bf16.mxu0 0
        %563 = vmatpush1.bf16.msra.mxu0 0
        %564 = vmatprep.subr.bf16.mxu0 0
        %565 = vmatpush1.bf16.msra.mxu0 0
        %566 = vmatprep.subr.bf16.mxu0 0
        %567 = vmatpush1.bf16.msra.mxu0 0
        %568 = vmatprep.subr.bf16.mxu0 0
        %569 = vmatpush1.bf16.msra.mxu0 0
        %570 = vmatprep.subr.bf16.mxu0 0
        %571 = vmatpush1.bf16.msra.mxu0 0
        %572 = vmatprep.subr.bf16.mxu0 0
        %573 = vmatpush1.bf16.msra.mxu0 0
        %574 = vmatprep.subr.bf16.mxu0 0
        %575 = vmatpush1.bf16.msra.mxu0 0
        %576 = vmatprep.subr.bf16.mxu0 0
        %577 = vmatpush1.bf16.msra.mxu0 0
        %578 = vmatprep.mubr.bf16.mxu0 0
        %579 = vmatmul.mubr.bf16.gmra.mrb[0].mxu0 %v544
        %v580 = vpop.f32.mrb[0].mxu0
        %v581 = vadd.f32 0.0, %v580
        %v582 = vpop.f32.mrb[0].mxu0
        %v583 = vpop.f32.mrb[0].mxu0
        %v584 = vpop.f32.mrb[0].mxu0
        %585 = vdwg.mxu0
        %v587 = vlaneseq
        %v588 = vshrl.u32 %v587, 7
        %v589 = vsub.s32 0, %v588
        %v590 = vrot.slane %v453, %v589
        %v592 = vsub.f32 %v581, %v590
        %vm593 = vcmask 523264
        %v594 = vsel %vm593, %v592, -inf
        %595 = vmax.xlane.f32.xlu0 %v594
        %v596 = vpop.xlane.xlu0 %595
        %v597 = vsub.f32 %v592, %v596
        %v598 = vmul.f32 %v597, 1.442695
        %v599 = vpow.pop %v598
        %v601 = vsel %vm593, %v599, 0
        %603 = vmatprep.subr.mxu0 0.0
        %604 = vmatpush1.msra.mxu0 %v460
        %605 = vmatprep.subr.mxu0 0.0
        %606 = vmatpush1.msra.mxu0 %v461
        %607 = vmatprep.subr.mxu0 0.0
        %608 = vmatpush1.msra.mxu0 %v462
        %609 = vmatprep.subr.mxu0 0.0
        %610 = vmatpush1.msra.mxu0 %v463
        %611 = vmatprep.subr.mxu0 0.0
        %612 = vmatpush1.msra.mxu0 %v464
        %613 = vmatprep.subr.mxu0 0.0
        %614 = vmatpush1.msra.mxu0 %v465
        %615 = vmatprep.subr.mxu0 0.0
        %616 = vmatpush1.msra.mxu0 %v466
        %617 = vmatprep.subr.mxu0 0.0
        %618 = vmatpush1.msra.mxu0 %v467
        %619 = vmatprep.subr.mxu0 0.0
        %620 = vmatpush1.msra.mxu0 0.0
        %621 = vmatprep.subr.mxu0 0.0
        %622 = vmatpush1.msra.mxu0 0.0
        %623 = vmatprep.subr.mxu0 0.0
        %624 = vmatpush1.msra.mxu0 0.0
        %625 = vmatprep.subr.mxu0 0.0
        %626 = vmatpush1.msra.mxu0 0.0
        %627 = vmatprep.subr.mxu0 0.0
        %628 = vmatpush1.msra.mxu0 0.0
        %629 = vmatprep.subr.mxu0 0.0
        %630 = vmatpush1.msra.mxu0 0.0
        %631 = vmatprep.subr.mxu0 0.0
        %632 = vmatpush1.msra.mxu0 0.0
        %633 = vmatprep.subr.mxu0 0.0
        %634 = vmatpush1.msra.mxu0 0.0
        %635 = vmatprep.subr.mxu0 0.0
        %636 = vmatpush1.msra.mxu0 0.0
        %637 = vmatprep.subr.mxu0 0.0
        %638 = vmatpush1.msra.mxu0 0.0
        %639 = vmatprep.subr.mxu0 0.0
        %640 = vmatpush1.msra.mxu0 0.0
        %641 = vmatprep.subr.mxu0 0.0
        %642 = vmatpush1.msra.mxu0 0.0
        %643 = vmatprep.subr.mxu0 0.0
        %644 = vmatpush1.msra.mxu0 0.0
        %645 = vmatprep.subr.mxu0 0.0
        %646 = vmatpush1.msra.mxu0 0.0
        %647 = vmatprep.subr.mxu0 0.0
        %648 = vmatpush1.msra.mxu0 0.0
        %649 = vmatprep.subr.mxu0 0.0
        %650 = vmatpush1.msra.mxu0 0.0
        %651 = vmatprep.subr.mxu0 0.0
        %652 = vmatpush1.msra.mxu0 0.0
        %653 = vmatprep.subr.mxu0 0.0
        %654 = vmatpush1.msra.mxu0 0.0
        %655 = vmatprep.subr.mxu0 0.0
        %656 = vmatpush1.msra.mxu0 0.0
        %657 = vmatprep.subr.mxu0 0.0
        %658 = vmatpush1.msra.mxu0 0.0
        %659 = vmatprep.subr.mxu0 0.0
        %660 = vmatpush1.msra.mxu0 0.0
        %661 = vmatprep.subr.mxu0 0.0
        %662 = vmatpush1.msra.mxu0 0.0
        %663 = vmatprep.subr.mxu0 0.0
        %664 = vmatpush1.msra.mxu0 0.0
        %665 = vmatprep.subr.mxu0 0.0
        %666 = vmatpush1.msra.mxu0 0.0
        %667 = vmatprep.mubr.f32.mxu0 0.0
        %668 = vmatmul.mubr.f32.gmra.mrb[0].mxu0 %v601
        %v669 = vpop.f32.mrb[0].mxu0
        %v670 = vadd.f32 0.0, %v669
        %v671 = vpop.f32.mrb[0].mxu0
        %672 = vdwg.mxu0
        %v673 = vmax.f32 %v670, 1e-30
        %v674 = vrcp.pop %v673
        %v675 = vmul.f32 %v599, %v674
        %v676 = vlaneseq
        %v677 = vshrl.u32 %v676, 7
        %v678 = vlaneseq
        %v679 = vand.u32 %v678, 127
        %vm680 = vcmp.eq.s32.totalorder %v677, %v679
        %v682 = vlaneseq
        %v683 = vshrl.u32 %v682, 7
        %v684 = vsub.s32 0, %v683
        %v685 = vrot.slane %v454, %v684
        %v687 = vsel %vm680, %v685, 0.0
        %vm688 = vcmask 64512
        %v689 = vsel %vm688, %v687, 0.0
        %690 = vadd.xlane.f32.xlu0 %v689
        %v691 = vpop.xlane.xlu0 %690
        %v692 = vmul.f32 %v675, %v691
        %v693 = vsel %vm593, %v692, -inf
        %v694 = vrot.slane %v693, 4
        %v695 = vmax.f32 %v693, %v694
        %v696 = vrot.slane %v695, 2
        %v697 = vmax.f32 %v695, %v696
        %v698 = vrot.slane %v697, 1
        %v699 = vmax.f32 %v697, %v698
        %701 = vrot.lane.b32.xlu0 %v699, 112
        %v702 = vpop.permute.xlu0 %701
        %v704 = vadd.f32 %v699, %v702
        %705 = vrot.lane.b32.xlu0 %v699, 96
        %v706 = vpop.permute.xlu0 %705
        %v708 = vadd.f32 %v704, %v706
        %709 = vrot.lane.b32.xlu0 %v699, 80
        %v710 = vpop.permute.xlu0 %709
        %v712 = vadd.f32 %v708, %v710
        %vm713 = vcmask 130048
        %v714 = vsel %vm713, %v712, 0.0
        %715 = vst [vmem:[%s421] sm:$0x1] %v714
        %v716 = vpack.c.bf16 %v692, %v692
        %v725 = vunpack.c.l.b16 %v445
        %v726 = vunpack.c.l.b16 %v446
        %v727 = vunpack.c.l.b16 %v447
        %v728 = vunpack.c.l.b16 %v448
        %v729 = vunpack.c.l.b16 %v449
        %v730 = vunpack.c.l.b16 %v450
        %v731 = vunpack.c.l.b16 %v451
        %v732 = vunpack.c.l.b16 %v452
        %v733 = vpack.c.b16 %v726, %v725
        %v734 = vpack.c.b16 %v728, %v727
        %v735 = vpack.c.b16 %v730, %v729
        %v736 = vpack.c.b16 %v732, %v731
        %v742 = vsel %vm593, %v716, 0
        %744 = vmatprep.subr.bf16.mxu0 0
        %745 = vmatpush1.bf16.msra.mxu0 %v733
        %746 = vmatprep.subr.bf16.mxu0 0
        %747 = vmatpush1.bf16.msra.mxu0 %v734
        %748 = vmatprep.subr.bf16.mxu0 0
        %749 = vmatpush1.bf16.msra.mxu0 %v735
        %750 = vmatprep.subr.bf16.mxu0 0
        %751 = vmatpush1.bf16.msra.mxu0 %v736
        %752 = vmatprep.subr.bf16.mxu0 0
        %753 = vmatpush1.bf16.msra.mxu0 0
        %754 = vmatprep.subr.bf16.mxu0 0
        %755 = vmatpush1.bf16.msra.mxu0 0
        %756 = vmatprep.subr.bf16.mxu0 0
        %757 = vmatpush1.bf16.msra.mxu0 0
        %758 = vmatprep.subr.bf16.mxu0 0
        %759 = vmatpush1.bf16.msra.mxu0 0
        %760 = vmatprep.subr.bf16.mxu0 0
        %761 = vmatpush1.bf16.msra.mxu0 0
        %762 = vmatprep.subr.bf16.mxu0 0
        %763 = vmatpush1.bf16.msra.mxu0 0
        %764 = vmatprep.subr.bf16.mxu0 0
        %765 = vmatpush1.bf16.msra.mxu0 0
        %766 = vmatprep.subr.bf16.mxu0 0
        %767 = vmatpush1.bf16.msra.mxu0 0
        %768 = vmatprep.subr.bf16.mxu0 0
        %769 = vmatpush1.bf16.msra.mxu0 0
        %770 = vmatprep.subr.bf16.mxu0 0
        %771 = vmatpush1.bf16.msra.mxu0 0
        %772 = vmatprep.subr.bf16.mxu0 0
        %773 = vmatpush1.bf16.msra.mxu0 0
        %774 = vmatprep.subr.bf16.mxu0 0
        %775 = vmatpush1.bf16.msra.mxu0 0
        %776 = vmatprep.mubr.bf16.mxu0 0
        %777 = vmatmul.mubr.bf16.gmra.mrb[0].mxu0 %v742
        %v778 = vpop.f32.mrb[0].mxu0
        %v779 = vadd.f32 0.0, %v778
        %v780 = vpop.f32.mrb[0].mxu0
        %v781 = vpop.f32.mrb[0].mxu0
        %v782 = vpop.f32.mrb[0].mxu0
        %783 = vdwg.mxu0
        %784 = vst.msk [vmem:[%s415] sm:$0xff] %vm486, %v779
        %s785 = sand.u32 %s232, 1
        %s786 = scalar_lea.sflag [#allocation4], %s785
        %s787 = sand.u32 %s232, 1
        %s788 = smul.addr %s787, 8
        %s789 = scalar_lea.vmem [#allocation7], %s788
        %s790 = sand.u32 %s258, 1
        %s791 = scalar_lea.sflag [#allocation9], %s790
        %s792 = sand.u32 %s258, 1
        %s793 = scalar_lea.vmem [#allocation8], %s792
        // Predicated region
        $region61: #{tpu_custom_call.1} parent=51 // pred_check
          %p794 = pneg %p242
        $region62: #{tpu_custom_call.1} parent=51 // pred_check_branch
          %796 = sbr.rel (%p794) target = $region64
        $region63: #{tpu_custom_call.1} parent=51 // pred_region
          %s798 = ssub.s32 128, 128
          %799 = vsyncadd %s786, %s798
          %s800 = smul.addr %s31, 128
          %s801 = scalar_lea.hbm %s8, %s800
          %s803 = sshll.u32 %s789, 4
          %s804 = int_to_ptr.vmem [resolvable:$true] %s803
          %806 = dma.vmem_to_hbm [thread:$0]  %s804, 128, %s801, %s786
        $region64: #{tpu_custom_call.1} parent=51 // pred_fallthru
          _
        // Predicated region
        $region65: #{tpu_custom_call.1} parent=51 // pred_check
          %p807 = pneg %p268
        $region66: #{tpu_custom_call.1} parent=51 // pred_check_branch
          %809 = sbr.rel (%p807) target = $region68
        $region67: #{tpu_custom_call.1} parent=51 // pred_region
          %s811 = ssub.s32 16, 16
          %812 = vsyncadd %s791, %s811
          %s813 = smul.addr %s31, 16
          %s814 = scalar_lea.hbm %s9, %s813
          %s816 = sshll.u32 %s793, 4
          %s817 = int_to_ptr.vmem [resolvable:$true] %s816
          %819 = dma.vmem_to_hbm [thread:$0]  %s817, 16, %s814, %s791
        $region68: #{tpu_custom_call.1} parent=51 // pred_fallthru
          _
      $region52: #{tpu_custom_call.1} parent=5 // pred_fallthru
        _
      %p820 = scmp.le.s32.totalorder 2, %s26
      // Predicated region
      $region69: #{tpu_custom_call.1} parent=5 // pred_check
        %p821 = pneg %p820
      $region70: #{tpu_custom_call.1} parent=5 // pred_check_branch
        %823 = sbr.rel (%p821) target = $region72
      $region71: #{tpu_custom_call.1} parent=5 // pred_region
        %s824 = ssub.s32 %s26, 2
        // Predicated region
        $region73: #{tpu_custom_call.1} parent=71 // pred_check
          %p825 = pneg %p248
        $region74: #{tpu_custom_call.1} parent=71 // pred_check_branch
          %827 = sbr.rel (%p825) target = $region76
        $region75: #{tpu_custom_call.1} parent=71 // pred_region
          %s828 = sand.u32 %s233, 1
          %s829 = scalar_lea.sflag [#allocation4], %s828
          %s830 = sand.u32 %s233, 1
          %s831 = smul.addr %s830, 8
          %s832 = scalar_lea.vmem [#allocation7], %s831
          %833 = dma.done %s829, 128
        $region76: #{tpu_custom_call.1} parent=71 // pred_fallthru
          _
        // Predicated region
        $region77: #{tpu_custom_call.1} parent=71 // pred_check
          %p834 = pneg %p274
        $region78: #{tpu_custom_call.1} parent=71 // pred_check_branch
          %836 = sbr.rel (%p834) target = $region80
        $region79: #{tpu_custom_call.1} parent=71 // pred_region
          %s837 = sand.u32 %s259, 1
          %s838 = scalar_lea.sflag [#allocation9], %s837
          %s839 = sand.u32 %s259, 1
          %s840 = scalar_lea.vmem [#allocation8], %s839
          %841 = dma.done %s838, 16
        $region80: #{tpu_custom_call.1} parent=71 // pred_fallthru
          _
      $region72: #{tpu_custom_call.1} parent=5 // pred_fallthru
        _
    $region6: #{tpu_custom_call.1} parent=1 // loop_footer
      %s30 = sadd.s32 1, %s26
    $region7: #{tpu_custom_call.1} parent=1 // loop_footer_branch
      %25 = sbr.rel target = $region3
    $region8: #{tpu_custom_call.1} parent=1 // loop_exit
      _
    %842 = vsyncpa [#allocation3], 1
    %s843 = scalar_lea.sflag [#allocation3], 1
    %844 = vsyncpa %s843, 1
    %845 = vsyncpa [#allocation6], 1
    %846 = vsyncpa [#allocation4], 1
    %s847 = scalar_lea.sflag [#allocation4], 1
    %848 = vsyncpa %s847, 1
    %849 = vsyncpa [#allocation9], 1
    %s850 = scalar_lea.sflag [#allocation9], 1
    %851 = vsyncpa %s850, 1

</llo_original>
